<compile_context>
chip_gen: v7x
topology: tpu7x:2x2x1
jax: 0.10.0
libtpu: 0.0.40
codegen_flags: <defaults>
</compile_context>

<pallas_src>
import functools

import jax
import jax.numpy as jnp
from jax.experimental import pallas as pl
from jax.experimental.pallas import tpu as pltpu


def _coord_attention_kernel(x_ref, p_ref, w1_ref, b1_ref, w23_ref, b2_ref,
                            b3_ref, eh_ref, ew_ref, o_ref, *, H, nbCo):
    # Whole batch block as one lane-dense slab: (nb*C, HW).
    x = x_ref[...].astype(jnp.float32)

    # Coordinate pooling as a single MXU matmul; columns 0..H-1 are x_h
    # (mean over W), columns H..H+W-1 are x_w (mean over H).
    pooled = jnp.dot(x, p_ref[...], preferred_element_type=jnp.float32)      # (nb*C, H+W)

    # conv1 (1x1, BN folded) batched over the block via block-diagonal weight,
    # followed by h_swish.
    y = jnp.dot(w1_ref[...], pooled, preferred_element_type=jnp.float32) + b1_ref[...]
    y = y * jnp.clip(y + 3.0, 0.0, 6.0) * (1.0 / 6.0)                         # (nb*T, H+W)

    # conv2/conv3 fused into one matmul; conv2 rows first, conv3 rows second,
    # so the split lands on a sublane-multiple-of-8 boundary.
    z = jnp.dot(w23_ref[...], y, preferred_element_type=jnp.float32)          # (2*nb*Co, H+W)
    out_h = jax.nn.sigmoid(z[:nbCo, :H] + b2_ref[...])                        # (nb*Co, H)
    out_w = jax.nn.sigmoid(z[nbCo:, H:] + b3_ref[...])                        # (nb*Co, W)

    # Lane-dense attention map expansion: att[r, h*W+w] = out_h[r,h]*out_w[r,w]
    att = (jnp.dot(out_h, eh_ref[...], preferred_element_type=jnp.float32)
           * jnp.dot(out_w, ew_ref[...], preferred_element_type=jnp.float32))  # (nb*Co, HW)

    o_ref[...] = (x * att).astype(o_ref.dtype)


def _pick_batch_block(N, C, cap):
    """Largest divisor of N <= cap, preferring ones with (nb*C) % 8 == 0."""
    best, best_aligned = 1, None
    for d in range(1, min(N, cap) + 1):
        if N % d == 0:
            best = d
            if (d * C) % 8 == 0:
                best_aligned = d
    if best_aligned is not None:
        return best_aligned
    if N <= cap:
        return N          # single full-extent block is always layout-legal
    return best


def coord_attention(x, w1_eff, b1_eff, w2, b2, w3, b3, *, batch_block=None):
    N, C, H, W = x.shape
    T = w1_eff.shape[0]
    Co = w2.shape[0]
    # Final broadcastable multiply (short * out_w * out_h) requires Co == C.
    assert Co == C and w3.shape[0] == Co, \
        "CoordAttention requires out_channels == in_channels"

    HW = H * W
    L = H + W
    f32 = jnp.float32
    itemsize = jnp.dtype(x.dtype).itemsize

    # Target MiB-scale input blocks at production N (toy N=2 -> one step).
    target_block_bytes = 2 << 20
    cap = max(1, target_block_bytes // max(1, C * HW * itemsize))
    nb = batch_block if batch_block is not None else _pick_batch_block(N, C, cap)
    assert N % nb == 0
    nsteps = N // nb

    # ---- wrapper-side constant construction (tiny, one-time) ----
    # Expansion matrices (also reused to build the pooling matrix).
    eh = jnp.repeat(jnp.eye(H, dtype=f32), W, axis=1)            # (H, HW): row h -> lanes h*W..h*W+W-1
    ew = jnp.tile(jnp.eye(W, dtype=f32), (1, H))                 # (W, HW): row w -> lanes h*W+w for all h
    pmat = jnp.concatenate([eh.T / W, ew.T / H], axis=1)         # (HW, H+W): [mean over W ; mean over H]

    eye_nb = jnp.eye(nb, dtype=f32)
    w1_blk = jnp.kron(eye_nb, w1_eff.astype(f32))                # (nb*T, nb*C) block-diagonal
    w23_blk = jnp.concatenate(
        [jnp.kron(eye_nb, w2.astype(f32)),                       # conv2 rows first
         jnp.kron(eye_nb, w3.astype(f32))], axis=0)              # conv3 rows second -> split at nb*Co
    b1_bc = jnp.tile(b1_eff.astype(f32)[:, None], (nb, L))       # (nb*T, H+W)
    b2_bc = jnp.tile(b2.astype(f32)[:, None], (nb, H))           # (nb*Co, H)
    b3_bc = jnp.tile(b3.astype(f32)[:, None], (nb, W))           # (nb*Co, W)

    # Batch folded into sublanes; spatial axis stays lane-dense.
    x2 = x.reshape(N * C, HW)

    kernel = functools.partial(_coord_attention_kernel, H=H, nbCo=nb * Co)

    # VMEM budget: double-buffered in/out blocks + the small constants.
    block_bytes = nb * C * HW * itemsize
    const_bytes = 4 * (pmat.size + w1_blk.size + w23_blk.size + b1_bc.size
                       + b2_bc.size + b3_bc.size + eh.size + ew.size)
    needed = 4 * block_bytes + 2 * const_bytes + (2 << 20)
    vmem_limit = int(min(needed, 48 << 20)) if needed > (16 << 20) else None

    # Advisory cost estimate: bandwidth-bound, tiny flops.
    flops = (2 * N * C * HW * L            # pooling matmul
             + 2 * N * T * C * L           # conv1
             + 2 * N * (2 * Co) * T * L    # fused conv2/conv3
             + 2 * N * Co * HW * (H + W)   # attention expansion matmuls
             + 2 * N * C * HW)             # elementwise products
    cost = pl.CostEstimate(flops=int(flops),
                           transcendentals=int(N * Co * L),
                           bytes_accessed=int(2 * N * C * HW * itemsize + const_bytes))

    out2 = pl.pallas_call(
        kernel,
        out_shape=jax.ShapeDtypeStruct((N * C, HW), x.dtype),
        grid_spec=pltpu.PrefetchScalarGridSpec(
            num_scalar_prefetch=0,
            grid=(nsteps,),
            in_specs=[
                pl.BlockSpec((nb * C, HW), lambda i: (i, 0)),        # x slab
                pl.BlockSpec((HW, L), lambda i: (0, 0)),             # pooling matrix
                pl.BlockSpec((nb * T, nb * C), lambda i: (0, 0)),    # block-diag conv1
                pl.BlockSpec((nb * T, L), lambda i: (0, 0)),         # b1
                pl.BlockSpec((2 * nb * Co, nb * T), lambda i: (0, 0)),  # stacked conv2/conv3
                pl.BlockSpec((nb * Co, H), lambda i: (0, 0)),        # b2
                pl.BlockSpec((nb * Co, W), lambda i: (0, 0)),        # b3
                pl.BlockSpec((H, HW), lambda i: (0, 0)),             # E_h
                pl.BlockSpec((W, HW), lambda i: (0, 0)),             # E_w
            ],
            out_specs=pl.BlockSpec((nb * C, HW), lambda i: (i, 0)),
        ),
        compiler_params=pltpu.CompilerParams(
            dimension_semantics=("parallel",),
            vmem_limit_bytes=vmem_limit),
        cost_estimate=cost,
    )(x2, pmat, w1_blk, b1_bc, w23_blk, b2_bc, b3_bc, eh, ew)

    return out2.reshape(N, C, H, W)


def ref_forward(x, p, eps=1e-5):
    """Pure-JAX reference mirroring the PyTorch forward (BN in eval mode)."""
    N, C, H, W = x.shape
    x_h = jnp.mean(x, axis=3)                           # (N, C, H)
    x_w = jnp.mean(x, axis=2)                           # (N, C, W)
    cat = jnp.concatenate([x_h, x_w], axis=2)           # (N, C, H+W)
    y = jnp.einsum('tc,ncl->ntl', p['conv1_w'], cat) + p['conv1_b'][None, :, None]
    scale = p['bn_gamma'] / jnp.sqrt(p['bn_var'] + eps)
    y = (y - p['bn_mean'][None, :, None]) * scale[None, :, None] + p['bn_beta'][None, :, None]
    y = y * jnp.clip(y + 3.0, 0.0, 6.0) / 6.0
    a_h, a_w = y[:, :, :H], y[:, :, H:]
    out_h = jax.nn.sigmoid(jnp.einsum('ot,nth->noh', p['conv2_w'], a_h)
                           + p['conv2_b'][None, :, None])
    out_w = jax.nn.sigmoid(jnp.einsum('ot,ntw->now', p['conv3_w'], a_w)
                           + p['conv3_b'][None, :, None])
    return x * out_w[:, :, None, :] * out_h[:, :, :, None]


if __name__ == "__main__":
    # Module config: in_channels = out_channels = 4, reduction = 16
    # -> temp_c = max(8, 4 // 16) = 8
    N, C, H, W = 2, 4, 16, 16
    Cout = C
    T = max(8, C // 16)
    eps = 1e-5

    key = jax.random.PRNGKey(0)
    ks = jax.random.split(key, 10)
    params = {
        'conv1_w': 0.3 * jax.random.normal(ks[0], (T, C), jnp.float32),
        'conv1_b': 0.1 * jax.random.normal(ks[1], (T,), jnp.float32),
        'bn_gamma': 1.0 + 0.1 * jax.random.normal(ks[2], (T,), jnp.float32),
        'bn_beta': 0.1 * jax.random.normal(ks[3], (T,), jnp.float32),
        'bn_mean': 0.1 * jax.random.normal(ks[4], (T,), jnp.float32),
        'bn_var': jnp.abs(jax.random.normal(ks[5], (T,), jnp.float32)) + 0.5,
        'conv2_w': 0.3 * jax.random.normal(ks[6], (Cout, T), jnp.float32),
        'conv2_b': 0.1 * jax.random.normal(ks[7], (Cout,), jnp.float32),
        'conv3_w': 0.3 * jax.random.normal(ks[8], (Cout, T), jnp.float32),
        'conv3_b': 0.1 * jax.random.normal(ks[9], (Cout,), jnp.float32),
    }

    x = jax.random.normal(jax.random.PRNGKey(1), (N, C, H, W), jnp.float32)

    # Fold BatchNorm (eval stats) into conv1's weight/bias (glue, not hot path).
    scale = params['bn_gamma'] / jnp.sqrt(params['bn_var'] + eps)
    w1_eff = params['conv1_w'] * scale[:, None]
    b1_eff = (params['conv1_b'] - params['bn_mean']) * scale + params['bn_beta']

    out = coord_attention(x, w1_eff, b1_eff,
                          params['conv2_w'], params['conv2_b'],
                          params['conv3_w'], params['conv3_b'])
    out = jax.block_until_ready(out)

    ref = ref_forward(x, params, eps)
    assert out.shape == (N, C, H, W)
    assert jnp.allclose(out, ref, atol=1e-5, rtol=1e-5), "mismatch vs reference"

    print("KERNEL_OK")
</pallas_src>

<mosaic_0001>
module attributes {stable_mosaic.version = 11 : i64} {
  func.func @_coord_attention_kernel(%arg0: i32, %arg1: memref<8x256xf32, #tpu.memory_space<vmem>>, %arg2: memref<256x32xf32, #tpu.memory_space<vmem>>, %arg3: memref<16x8xf32, #tpu.memory_space<vmem>>, %arg4: memref<16x32xf32, #tpu.memory_space<vmem>>, %arg5: memref<16x16xf32, #tpu.memory_space<vmem>>, %arg6: memref<8x16xf32, #tpu.memory_space<vmem>>, %arg7: memref<8x16xf32, #tpu.memory_space<vmem>>, %arg8: memref<16x256xf32, #tpu.memory_space<vmem>>, %arg9: memref<16x256xf32, #tpu.memory_space<vmem>>, %arg10: memref<8x256xf32, #tpu.memory_space<vmem>>) attributes {dimension_semantics = [#tpu.dimension_semantics<parallel>], iteration_bounds = array<i64: 1>, scalar_prefetch = 0 : i64, scratch_operands = 0 : i64, tpu.core_type = #tpu.core_type<tc>, window_params = [{transform_indices = @transform_0, window_bounds = array<i64: 8, 256>}, {pipeline_mode = #tpu.pipeline_mode<synchronous>, transform_indices = @transform_1, window_bounds = array<i64: 256, 32>}, {pipeline_mode = #tpu.pipeline_mode<synchronous>, transform_indices = @transform_2, window_bounds = array<i64: 16, 8>}, {pipeline_mode = #tpu.pipeline_mode<synchronous>, transform_indices = @transform_3, window_bounds = array<i64: 16, 32>}, {pipeline_mode = #tpu.pipeline_mode<synchronous>, transform_indices = @transform_4, window_bounds = array<i64: 16, 16>}, {pipeline_mode = #tpu.pipeline_mode<synchronous>, transform_indices = @transform_5, window_bounds = array<i64: 8, 16>}, {pipeline_mode = #tpu.pipeline_mode<synchronous>, transform_indices = @transform_6, window_bounds = array<i64: 8, 16>}, {pipeline_mode = #tpu.pipeline_mode<synchronous>, transform_indices = @transform_7, window_bounds = array<i64: 16, 256>}, {pipeline_mode = #tpu.pipeline_mode<synchronous>, transform_indices = @transform_8, window_bounds = array<i64: 16, 256>}, {transform_indices = @transform_9, window_bounds = array<i64: 8, 256>}]} {
    %c0 = arith.constant 0 : index
    %c0_0 = arith.constant 0 : index
    %0 = vector.load %arg1[%c0, %c0_0] : memref<8x256xf32, #tpu.memory_space<vmem>>, vector<8x256xf32>
    %c0_1 = arith.constant 0 : index
    %c0_2 = arith.constant 0 : index
    %1 = vector.load %arg2[%c0_1, %c0_2] : memref<256x32xf32, #tpu.memory_space<vmem>>, vector<256x32xf32>
    %cst = arith.constant dense<0.000000e+00> : vector<8x32xf32>
    %2 = tpu.matmul %0, %1, %cst {dimension_numbers = #tpu.dot_dimension_numbers<[1], [0], [0], [1], [0, 0, 1, 1], [], []>} : vector<8x256xf32>, vector<256x32xf32>, vector<8x32xf32> -> vector<8x32xf32>
    %c0_3 = arith.constant 0 : index
    %c0_4 = arith.constant 0 : index
    %3 = vector.load %arg3[%c0_3, %c0_4] : memref<16x8xf32, #tpu.memory_space<vmem>>, vector<16x8xf32>
    %cst_5 = arith.constant dense<0.000000e+00> : vector<16x32xf32>
    %4 = tpu.matmul %3, %2, %cst_5 {dimension_numbers = #tpu.dot_dimension_numbers<[1], [0], [0], [1], [0, 0, 1, 1], [], []>} : vector<16x8xf32>, vector<8x32xf32>, vector<16x32xf32> -> vector<16x32xf32>
    %c0_6 = arith.constant 0 : index
    %c0_7 = arith.constant 0 : index
    %5 = vector.load %arg4[%c0_6, %c0_7] : memref<16x32xf32, #tpu.memory_space<vmem>>, vector<16x32xf32>
    %6 = arith.addf %4, %5 : vector<16x32xf32>
    %cst_8 = arith.constant 3.000000e+00 : f32
    %7 = vector.broadcast %cst_8 : f32 to vector<16x32xf32>
    %8 = arith.addf %6, %7 : vector<16x32xf32>
    %cst_9 = arith.constant 0.000000e+00 : f32
    %cst_10 = arith.constant 6.000000e+00 : f32
    %9 = vector.broadcast %cst_9 : f32 to vector<16x32xf32>
    %10 = arith.maximumf %9, %8 : vector<16x32xf32>
    %11 = vector.broadcast %cst_10 : f32 to vector<16x32xf32>
    %12 = arith.minimumf %11, %10 : vector<16x32xf32>
    %13 = arith.mulf %6, %12 : vector<16x32xf32>
    %cst_11 = arith.constant 0.166666672 : f32
    %14 = vector.broadcast %cst_11 : f32 to vector<16x32xf32>
    %15 = arith.mulf %13, %14 : vector<16x32xf32>
    %c0_12 = arith.constant 0 : index
    %c0_13 = arith.constant 0 : index
    %16 = vector.load %arg5[%c0_12, %c0_13] : memref<16x16xf32, #tpu.memory_space<vmem>>, vector<16x16xf32>
    %cst_14 = arith.constant dense<0.000000e+00> : vector<16x32xf32>
    %17 = tpu.matmul %16, %15, %cst_14 {dimension_numbers = #tpu.dot_dimension_numbers<[1], [0], [0], [1], [0, 0, 1, 1], [], []>} : vector<16x16xf32>, vector<16x32xf32>, vector<16x32xf32> -> vector<16x32xf32>
    %18 = vector.extract_strided_slice %17 {offsets = [0, 0], sizes = [8, 16], strides = [1, 1]} : vector<16x32xf32> to vector<8x16xf32>
    %c0_15 = arith.constant 0 : index
    %c0_16 = arith.constant 0 : index
    %19 = vector.load %arg6[%c0_15, %c0_16] : memref<8x16xf32, #tpu.memory_space<vmem>>, vector<8x16xf32>
    %20 = arith.addf %18, %19 : vector<8x16xf32>
    %21 = arith.negf %20 : vector<8x16xf32>
    %22 = math.exp %21 : vector<8x16xf32>
    %cst_17 = arith.constant 1.000000e+00 : f32
    %23 = vector.broadcast %cst_17 : f32 to vector<8x16xf32>
    %24 = arith.addf %23, %22 : vector<8x16xf32>
    %25 = arith.divf %23, %24 : vector<8x16xf32>
    %26 = vector.extract_strided_slice %17 {offsets = [8, 16], sizes = [8, 16], strides = [1, 1]} : vector<16x32xf32> to vector<8x16xf32>
    %c0_18 = arith.constant 0 : index
    %c0_19 = arith.constant 0 : index
    %27 = vector.load %arg7[%c0_18, %c0_19] : memref<8x16xf32, #tpu.memory_space<vmem>>, vector<8x16xf32>
    %28 = arith.addf %26, %27 : vector<8x16xf32>
    %29 = arith.negf %28 : vector<8x16xf32>
    %30 = math.exp %29 : vector<8x16xf32>
    %cst_20 = arith.constant 1.000000e+00 : f32
    %31 = vector.broadcast %cst_20 : f32 to vector<8x16xf32>
    %32 = arith.addf %31, %30 : vector<8x16xf32>
    %33 = arith.divf %31, %32 : vector<8x16xf32>
    %c0_21 = arith.constant 0 : index
    %c0_22 = arith.constant 0 : index
    %34 = vector.load %arg8[%c0_21, %c0_22] : memref<16x256xf32, #tpu.memory_space<vmem>>, vector<16x256xf32>
    %cst_23 = arith.constant dense<0.000000e+00> : vector<8x256xf32>
    %35 = tpu.matmul %25, %34, %cst_23 {dimension_numbers = #tpu.dot_dimension_numbers<[1], [0], [0], [1], [0, 0, 1, 1], [], []>} : vector<8x16xf32>, vector<16x256xf32>, vector<8x256xf32> -> vector<8x256xf32>
    %c0_24 = arith.constant 0 : index
    %c0_25 = arith.constant 0 : index
    %36 = vector.load %arg9[%c0_24, %c0_25] : memref<16x256xf32, #tpu.memory_space<vmem>>, vector<16x256xf32>
    %cst_26 = arith.constant dense<0.000000e+00> : vector<8x256xf32>
    %37 = tpu.matmul %33, %36, %cst_26 {dimension_numbers = #tpu.dot_dimension_numbers<[1], [0], [0], [1], [0, 0, 1, 1], [], []>} : vector<8x16xf32>, vector<16x256xf32>, vector<8x256xf32> -> vector<8x256xf32>
    %38 = arith.mulf %35, %37 : vector<8x256xf32>
    %39 = arith.mulf %0, %38 : vector<8x256xf32>
    %c0_27 = arith.constant 0 : index
    %c0_28 = arith.constant 0 : index
    %40 = vector.load %arg10[%c0_27, %c0_28] : memref<8x256xf32, #tpu.memory_space<vmem>>, vector<8x256xf32>
    tpu.vector_store %arg10[%c0_27, %c0_28], %39 {strides = array<i32>} : memref<8x256xf32, #tpu.memory_space<vmem>>, vector<8x256xf32>,
    return
  }
  func.func @transform_0(%arg0: i32) -> (i32, i32) {
    %c0_i32 = arith.constant 0 : i32
    %c0_i32_0 = arith.constant 0 : i32
    return %arg0, %c0_i32 : i32, i32
  }
  func.func @transform_1(%arg0: i32) -> (i32, i32) {
    %c0_i32 = arith.constant 0 : i32
    %c0_i32_0 = arith.constant 0 : i32
    %c0_i32_1 = arith.constant 0 : i32
    return %c0_i32, %c0_i32_0 : i32, i32
  }
  func.func @transform_2(%arg0: i32) -> (i32, i32) {
    %c0_i32 = arith.constant 0 : i32
    %c0_i32_0 = arith.constant 0 : i32
    %c0_i32_1 = arith.constant 0 : i32
    return %c0_i32, %c0_i32_0 : i32, i32
  }
  func.func @transform_3(%arg0: i32) -> (i32, i32) {
    %c0_i32 = arith.constant 0 : i32
    %c0_i32_0 = arith.constant 0 : i32
    %c0_i32_1 = arith.constant 0 : i32
    return %c0_i32, %c0_i32_0 : i32, i32
  }
  func.func @transform_4(%arg0: i32) -> (i32, i32) {
    %c0_i32 = arith.constant 0 : i32
    %c0_i32_0 = arith.constant 0 : i32
    %c0_i32_1 = arith.constant 0 : i32
    return %c0_i32, %c0_i32_0 : i32, i32
  }
  func.func @transform_5(%arg0: i32) -> (i32, i32) {
    %c0_i32 = arith.constant 0 : i32
    %c0_i32_0 = arith.constant 0 : i32
    %c0_i32_1 = arith.constant 0 : i32
    return %c0_i32, %c0_i32_0 : i32, i32
  }
  func.func @transform_6(%arg0: i32) -> (i32, i32) {
    %c0_i32 = arith.constant 0 : i32
    %c0_i32_0 = arith.constant 0 : i32
    %c0_i32_1 = arith.constant 0 : i32
    return %c0_i32, %c0_i32_0 : i32, i32
  }
  func.func @transform_7(%arg0: i32) -> (i32, i32) {
    %c0_i32 = arith.constant 0 : i32
    %c0_i32_0 = arith.constant 0 : i32
    %c0_i32_1 = arith.constant 0 : i32
    return %c0_i32, %c0_i32_0 : i32, i32
  }
  func.func @transform_8(%arg0: i32) -> (i32, i32) {
    %c0_i32 = arith.constant 0 : i32
    %c0_i32_0 = arith.constant 0 : i32
    %c0_i32_1 = arith.constant 0 : i32
    return %c0_i32, %c0_i32_0 : i32, i32
  }
  func.func @transform_9(%arg0: i32) -> (i32, i32) {
    %c0_i32 = arith.constant 0 : i32
    %c0_i32_0 = arith.constant 0 : i32
    return %arg0, %c0_i32 : i32, i32
  }
}

</mosaic_0001>

<llo_original>
// kernel: tpu_custom_call.1
$region0: #{tpu_custom_call.1}
  #allocation0 [shape = 'u32[]', space=smem, size = 0x4, offset = 0x4, fixed_abs, tag = 'smem constant byte address 0x4 - core index']
  #allocation1 [shape = 'u32[144,128]{1,0:T(1,128)}', space=vmem, size = 0x12000, scoped, tag = 'internal scratch']
  %s0 = inlined_call_operand.vmem [shape: f32[8,256], index: 0, kind: input, shape index: {}]
  %s1 = inlined_call_operand.vmem [shape: f32[256,32], index: 1, kind: input, shape index: {}]
  %s2 = inlined_call_operand.vmem [shape: f32[16,8], index: 2, kind: input, shape index: {}]
  %s3 = inlined_call_operand.vmem [shape: f32[16,32], index: 3, kind: input, shape index: {}]
  %s4 = inlined_call_operand.vmem [shape: f32[16,16], index: 4, kind: input, shape index: {}]
  %s5 = inlined_call_operand.vmem [shape: f32[8,16], index: 5, kind: input, shape index: {}]
  %s6 = inlined_call_operand.vmem [shape: f32[8,16], index: 6, kind: input, shape index: {}]
  %s7 = inlined_call_operand.vmem [shape: f32[16,256], index: 7, kind: input, shape index: {}]
  %s8 = inlined_call_operand.vmem [shape: f32[16,256], index: 8, kind: input, shape index: {}]
  %s9 = inlined_call_operand.hbm [shape: f32[8,256], index: 9, kind: output, shape index: {}]
  %s10 = sld [smem:[#allocation0]]
  $region46: #{tpu_custom_call.1} parent=0
    _
  %s12 = ssub.s32 1, %s10
  %s13 = scalar_select 0, %s12, %s10
  $region1: #{tpu_custom_call.1} parent=0
    #allocation2 [shape = 'u8[8192]{0}', space=vmem, size = 0x2000, scoped, tag = 'output window, operand 0, single buffered']
    #allocation3 [shape = 's32[1]{0}', space=sflag, size = 0x4, scoped, tag = 'scoped memory for tpu_custom_call.1']
    %14 = vsyncpa [#allocation3], 0
    // Predicated region
    $region2: #{tpu_custom_call.1} parent=1 // pred_check
      _
    $region3: #{tpu_custom_call.1} parent=1 // pred_check_branch
      %16 = sbr.rel (0) target = $region5
    $region4: #{tpu_custom_call.1} parent=1 // pred_region
      _
    $region5: #{tpu_custom_call.1} parent=1 // pred_fallthru
      _
    // Predicated region
    $region6: #{tpu_custom_call.1} parent=1 // pred_check
      _
    $region7: #{tpu_custom_call.1} parent=1 // pred_check_branch
      %18 = sbr.rel (0) target = $region9
    $region8: #{tpu_custom_call.1} parent=1 // pred_region
      _
    $region9: #{tpu_custom_call.1} parent=1 // pred_fallthru
      _
    // Predicated region
    $region10: #{tpu_custom_call.1} parent=1 // pred_check
      _
    $region11: #{tpu_custom_call.1} parent=1 // pred_check_branch
      %20 = sbr.rel (0) target = $region13
    $region12: #{tpu_custom_call.1} parent=1 // pred_region
      _
    $region13: #{tpu_custom_call.1} parent=1 // pred_fallthru
      _
    // Predicated region
    $region14: #{tpu_custom_call.1} parent=1 // pred_check
      _
    $region15: #{tpu_custom_call.1} parent=1 // pred_check_branch
      %22 = sbr.rel (0) target = $region17
    $region16: #{tpu_custom_call.1} parent=1 // pred_region
      _
    $region17: #{tpu_custom_call.1} parent=1 // pred_fallthru
      _
    // Predicated region
    $region18: #{tpu_custom_call.1} parent=1 // pred_check
      _
    $region19: #{tpu_custom_call.1} parent=1 // pred_check_branch
      %24 = sbr.rel (0) target = $region21
    $region20: #{tpu_custom_call.1} parent=1 // pred_region
      _
    $region21: #{tpu_custom_call.1} parent=1 // pred_fallthru
      _
    // Predicated region
    $region22: #{tpu_custom_call.1} parent=1 // pred_check
      _
    $region23: #{tpu_custom_call.1} parent=1 // pred_check_branch
      %26 = sbr.rel (0) target = $region25
    $region24: #{tpu_custom_call.1} parent=1 // pred_region
      _
    $region25: #{tpu_custom_call.1} parent=1 // pred_fallthru
      _
    // Predicated region
    $region26: #{tpu_custom_call.1} parent=1 // pred_check
      _
    $region27: #{tpu_custom_call.1} parent=1 // pred_check_branch
      %28 = sbr.rel (0) target = $region29
    $region28: #{tpu_custom_call.1} parent=1 // pred_region
      _
    $region29: #{tpu_custom_call.1} parent=1 // pred_fallthru
      _
    // Predicated region
    $region30: #{tpu_custom_call.1} parent=1 // pred_check
      _
    $region31: #{tpu_custom_call.1} parent=1 // pred_check_branch
      %30 = sbr.rel (0) target = $region33
    $region32: #{tpu_custom_call.1} parent=1 // pred_region
      _
    $region33: #{tpu_custom_call.1} parent=1 // pred_fallthru
      _
    // Predicated region
    $region34: #{tpu_custom_call.1} parent=1 // pred_check
      _
    $region35: #{tpu_custom_call.1} parent=1 // pred_check_branch
      %32 = sbr.rel (0) target = $region37
    $region36: #{tpu_custom_call.1} parent=1 // pred_region
      _
    $region37: #{tpu_custom_call.1} parent=1 // pred_fallthru
      _
    %v33 = vld [vmem:[%s0] sm:$0xff]
    %v34 = vld [vmem:[%s0 + $0x8] sm:$0xff]
    %v35 = vld [vmem:[%s1] sm:$0xff]
    %v36 = vld [vmem:[%s1 + $0x8] sm:$0xff]
    %v37 = vld [vmem:[%s1 + $0x10] sm:$0xff]
    %v38 = vld [vmem:[%s1 + $0x18] sm:$0xff]
    %v39 = vld [vmem:[%s1 + $0x20] sm:$0xff]
    %v40 = vld [vmem:[%s1 + $0x28] sm:$0xff]
    %v41 = vld [vmem:[%s1 + $0x30] sm:$0xff]
    %v42 = vld [vmem:[%s1 + $0x38] sm:$0xff]
    %v43 = vld [vmem:[%s1 + $0x40] sm:$0xff]
    %v44 = vld [vmem:[%s1 + $0x48] sm:$0xff]
    %v45 = vld [vmem:[%s1 + $0x50] sm:$0xff]
    %v46 = vld [vmem:[%s1 + $0x58] sm:$0xff]
    %v47 = vld [vmem:[%s1 + $0x60] sm:$0xff]
    %v48 = vld [vmem:[%s1 + $0x68] sm:$0xff]
    %v49 = vld [vmem:[%s1 + $0x70] sm:$0xff]
    %v50 = vld [vmem:[%s1 + $0x78] sm:$0xff]
    %v51 = vld [vmem:[%s1 + $0x80] sm:$0xff]
    %v52 = vld [vmem:[%s1 + $0x88] sm:$0xff]
    %v53 = vld [vmem:[%s1 + $0x90] sm:$0xff]
    %v54 = vld [vmem:[%s1 + $0x98] sm:$0xff]
    %v55 = vld [vmem:[%s1 + $0xa0] sm:$0xff]
    %v56 = vld [vmem:[%s1 + $0xa8] sm:$0xff]
    %v57 = vld [vmem:[%s1 + $0xb0] sm:$0xff]
    %v58 = vld [vmem:[%s1 + $0xb8] sm:$0xff]
    %v59 = vld [vmem:[%s1 + $0xc0] sm:$0xff]
    %v60 = vld [vmem:[%s1 + $0xc8] sm:$0xff]
    %v61 = vld [vmem:[%s1 + $0xd0] sm:$0xff]
    %v62 = vld [vmem:[%s1 + $0xd8] sm:$0xff]
    %v63 = vld [vmem:[%s1 + $0xe0] sm:$0xff]
    %v64 = vld [vmem:[%s1 + $0xe8] sm:$0xff]
    %v65 = vld [vmem:[%s1 + $0xf0] sm:$0xff]
    %v66 = vld [vmem:[%s1 + $0xf8] sm:$0xff]
    %67 = vmatprep.subr.mxu0 0.0
    %68 = vmatpush1.msra.mxu0 %v35
    %69 = vmatprep.subr.mxu0 0.0
    %70 = vmatpush1.msra.mxu0 %v36
    %71 = vmatprep.subr.mxu0 0.0
    %72 = vmatpush1.msra.mxu0 %v37
    %73 = vmatprep.subr.mxu0 0.0
    %74 = vmatpush1.msra.mxu0 %v38
    %75 = vmatprep.subr.mxu0 0.0
    %76 = vmatpush1.msra.mxu0 %v39
    %77 = vmatprep.subr.mxu0 0.0
    %78 = vmatpush1.msra.mxu0 %v40
    %79 = vmatprep.subr.mxu0 0.0
    %80 = vmatpush1.msra.mxu0 %v41
    %81 = vmatprep.subr.mxu0 0.0
    %82 = vmatpush1.msra.mxu0 %v42
    %83 = vmatprep.subr.mxu0 0.0
    %84 = vmatpush1.msra.mxu0 %v43
    %85 = vmatprep.subr.mxu0 0.0
    %86 = vmatpush1.msra.mxu0 %v44
    %87 = vmatprep.subr.mxu0 0.0
    %88 = vmatpush1.msra.mxu0 %v45
    %89 = vmatprep.subr.mxu0 0.0
    %90 = vmatpush1.msra.mxu0 %v46
    %91 = vmatprep.subr.mxu0 0.0
    %92 = vmatpush1.msra.mxu0 %v47
    %93 = vmatprep.subr.mxu0 0.0
    %94 = vmatpush1.msra.mxu0 %v48
    %95 = vmatprep.subr.mxu0 0.0
    %96 = vmatpush1.msra.mxu0 %v49
    %97 = vmatprep.subr.mxu0 0.0
    %98 = vmatpush1.msra.mxu0 %v50
    %99 = vmatprep.subr.mxu0 0.0
    %100 = vmatpush1.msra.mxu0 %v51
    %101 = vmatprep.subr.mxu0 0.0
    %102 = vmatpush1.msra.mxu0 %v52
    %103 = vmatprep.subr.mxu0 0.0
    %104 = vmatpush1.msra.mxu0 %v53
    %105 = vmatprep.subr.mxu0 0.0
    %106 = vmatpush1.msra.mxu0 %v54
    %107 = vmatprep.subr.mxu0 0.0
    %108 = vmatpush1.msra.mxu0 %v55
    %109 = vmatprep.subr.mxu0 0.0
    %110 = vmatpush1.msra.mxu0 %v56
    %111 = vmatprep.subr.mxu0 0.0
    %112 = vmatpush1.msra.mxu0 %v57
    %113 = vmatprep.subr.mxu0 0.0
    %114 = vmatpush1.msra.mxu0 %v58
    %115 = vmatprep.subr.mxu0 0.0
    %116 = vmatpush1.msra.mxu0 %v59
    %117 = vmatprep.subr.mxu0 0.0
    %118 = vmatpush1.msra.mxu0 %v60
    %119 = vmatprep.subr.mxu0 0.0
    %120 = vmatpush1.msra.mxu0 %v61
    %121 = vmatprep.subr.mxu0 0.0
    %122 = vmatpush1.msra.mxu0 %v62
    %123 = vmatprep.subr.mxu0 0.0
    %124 = vmatpush1.msra.mxu0 %v63
    %125 = vmatprep.subr.mxu0 0.0
    %126 = vmatpush1.msra.mxu0 %v64
    %127 = vmatprep.subr.mxu0 0.0
    %128 = vmatpush1.msra.mxu0 %v65
    %129 = vmatprep.subr.mxu0 0.0
    %130 = vmatpush1.msra.mxu0 %v66
    %131 = vmatprep.mubr.f32.mxu0 %v34
    %132 = vmatmul.mubr.f32.gmra.mrb[0].mxu0 %v33
    %v133 = vpop.f32.mrb[0].mxu0
    %v134 = vadd.f32 0.0, %v133
    %v135 = vpop.f32.mrb[0].mxu0
    %136 = vdwg.mxu0
    %v137 = vld [vmem:[%s2] sm:$0xff]
    %v138 = vld [vmem:[%s2 + $0x8] sm:$0xff]
    %v139 = vld [vmem:[%s3] sm:$0xff]
    %v140 = vld [vmem:[%s3 + $0x8] sm:$0xff]
    %vm141 = vcmask 64512
    %v143 = vsel %vm141, %v137, 0
    %v146 = vsel %vm141, %v138, 0
    %148 = vmatprep.subr.mxu0 0.0
    %149 = vmatpush1.msra.mxu0 %v134
    %150 = vmatprep.subr.mxu0 0.0
    %151 = vmatpush1.msra.mxu0 0.0
    %152 = vmatprep.subr.mxu0 0.0
    %153 = vmatpush1.msra.mxu0 0.0
    %154 = vmatprep.subr.mxu0 0.0
    %155 = vmatpush1.msra.mxu0 0.0
    %156 = vmatprep.subr.mxu0 0.0
    %157 = vmatpush1.msra.mxu0 0.0
    %158 = vmatprep.subr.mxu0 0.0
    %159 = vmatpush1.msra.mxu0 0.0
    %160 = vmatprep.subr.mxu0 0.0
    %161 = vmatpush1.msra.mxu0 0.0
    %162 = vmatprep.subr.mxu0 0.0
    %163 = vmatpush1.msra.mxu0 0.0
    %164 = vmatprep.subr.mxu0 0.0
    %165 = vmatpush1.msra.mxu0 0.0
    %166 = vmatprep.subr.mxu0 0.0
    %167 = vmatpush1.msra.mxu0 0.0
    %168 = vmatprep.subr.mxu0 0.0
    %169 = vmatpush1.msra.mxu0 0.0
    %170 = vmatprep.subr.mxu0 0.0
    %171 = vmatpush1.msra.mxu0 0.0
    %172 = vmatprep.subr.mxu0 0.0
    %173 = vmatpush1.msra.mxu0 0.0
    %174 = vmatprep.subr.mxu0 0.0
    %175 = vmatpush1.msra.mxu0 0.0
    %176 = vmatprep.subr.mxu0 0.0
    %177 = vmatpush1.msra.mxu0 0.0
    %178 = vmatprep.subr.mxu0 0.0
    %179 = vmatpush1.msra.mxu0 0.0
    %180 = vmatprep.subr.mxu0 0.0
    %181 = vmatpush1.msra.mxu0 0.0
    %182 = vmatprep.subr.mxu0 0.0
    %183 = vmatpush1.msra.mxu0 0.0
    %184 = vmatprep.subr.mxu0 0.0
    %185 = vmatpush1.msra.mxu0 0.0
    %186 = vmatprep.subr.mxu0 0.0
    %187 = vmatpush1.msra.mxu0 0.0
    %188 = vmatprep.subr.mxu0 0.0
    %189 = vmatpush1.msra.mxu0 0.0
    %190 = vmatprep.subr.mxu0 0.0
    %191 = vmatpush1.msra.mxu0 0.0
    %192 = vmatprep.subr.mxu0 0.0
    %193 = vmatpush1.msra.mxu0 0.0
    %194 = vmatprep.subr.mxu0 0.0
    %195 = vmatpush1.msra.mxu0 0.0
    %196 = vmatprep.subr.mxu0 0.0
    %197 = vmatpush1.msra.mxu0 0.0
    %198 = vmatprep.subr.mxu0 0.0
    %199 = vmatpush1.msra.mxu0 0.0
    %200 = vmatprep.subr.mxu0 0.0
    %201 = vmatpush1.msra.mxu0 0.0
    %202 = vmatprep.subr.mxu0 0.0
    %203 = vmatpush1.msra.mxu0 0.0
    %204 = vmatprep.subr.mxu0 0.0
    %205 = vmatpush1.msra.mxu0 0.0
    %206 = vmatprep.subr.mxu0 0.0
    %207 = vmatpush1.msra.mxu0 0.0
    %208 = vmatprep.subr.mxu0 0.0
    %209 = vmatpush1.msra.mxu0 0.0
    %210 = vmatprep.subr.mxu0 0.0
    %211 = vmatpush1.msra.mxu0 0.0
    %212 = vmatprep.mubr.f32.mxu0 0.0
    %213 = vmatmul.mubr.f32.gmra.mrb[0].mxu0 %v143
    %v214 = vpop.f32.mrb[0].mxu0
    %v215 = vadd.f32 %v139, %v214
    %v216 = vpop.f32.mrb[0].mxu0
    %217 = vmatprep.mubr.f32.mxu0 0.0
    %218 = vmatmul.mubr.f32.gmra.mrb[0].mxu0 %v146
    %v219 = vpop.f32.mrb[0].mxu0
    %v220 = vadd.f32 %v140, %v219
    %v221 = vpop.f32.mrb[0].mxu0
    %222 = vdwg.mxu0
    %v223 = vadd.f32 %v215, 3.0
    %v224 = vadd.f32 %v220, 3.0
    %v225 = vmax.f32 %v223, 0.0
    %v226 = vmax.f32 %v224, 0.0
    %v227 = vmin.f32 %v225, 6.0
    %v228 = vmin.f32 %v226, 6.0
    %v229 = vmul.f32 %v215, %v227
    %v230 = vmul.f32 %v220, %v228
    %v231 = vmul.f32 %v229, 0.16666667
    %v232 = vmul.f32 %v230, 0.16666667
    %v233 = vld [vmem:[%s4] sm:$0xff]
    %v234 = vld [vmem:[%s4 + $0x8] sm:$0xff]
    %vm235 = vcmask 130048
    %v237 = vsel %vm235, %v233, 0
    %v240 = vsel %vm235, %v234, 0
    %242 = vmatprep.subr.mxu0 0.0
    %243 = vmatpush1.msra.mxu0 %v231
    %244 = vmatprep.subr.mxu0 0.0
    %245 = vmatpush1.msra.mxu0 %v232
    %246 = vmatprep.subr.mxu0 0.0
    %247 = vmatpush1.msra.mxu0 0.0
    %248 = vmatprep.subr.mxu0 0.0
    %249 = vmatpush1.msra.mxu0 0.0
    %250 = vmatprep.subr.mxu0 0.0
    %251 = vmatpush1.msra.mxu0 0.0
    %252 = vmatprep.subr.mxu0 0.0
    %253 = vmatpush1.msra.mxu0 0.0
    %254 = vmatprep.subr.mxu0 0.0
    %255 = vmatpush1.msra.mxu0 0.0
    %256 = vmatprep.subr.mxu0 0.0
    %257 = vmatpush1.msra.mxu0 0.0
    %258 = vmatprep.subr.mxu0 0.0
    %259 = vmatpush1.msra.mxu0 0.0
    %260 = vmatprep.subr.mxu0 0.0
    %261 = vmatpush1.msra.mxu0 0.0
    %262 = vmatprep.subr.mxu0 0.0
    %263 = vmatpush1.msra.mxu0 0.0
    %264 = vmatprep.subr.mxu0 0.0
    %265 = vmatpush1.msra.mxu0 0.0
    %266 = vmatprep.subr.mxu0 0.0
    %267 = vmatpush1.msra.mxu0 0.0
    %268 = vmatprep.subr.mxu0 0.0
    %269 = vmatpush1.msra.mxu0 0.0
    %270 = vmatprep.subr.mxu0 0.0
    %271 = vmatpush1.msra.mxu0 0.0
    %272 = vmatprep.subr.mxu0 0.0
    %273 = vmatpush1.msra.mxu0 0.0
    %274 = vmatprep.subr.mxu0 0.0
    %275 = vmatpush1.msra.mxu0 0.0
    %276 = vmatprep.subr.mxu0 0.0
    %277 = vmatpush1.msra.mxu0 0.0
    %278 = vmatprep.subr.mxu0 0.0
    %279 = vmatpush1.msra.mxu0 0.0
    %280 = vmatprep.subr.mxu0 0.0
    %281 = vmatpush1.msra.mxu0 0.0
    %282 = vmatprep.subr.mxu0 0.0
    %283 = vmatpush1.msra.mxu0 0.0
    %284 = vmatprep.subr.mxu0 0.0
    %285 = vmatpush1.msra.mxu0 0.0
    %286 = vmatprep.subr.mxu0 0.0
    %287 = vmatpush1.msra.mxu0 0.0
    %288 = vmatprep.subr.mxu0 0.0
    %289 = vmatpush1.msra.mxu0 0.0
    %290 = vmatprep.subr.mxu0 0.0
    %291 = vmatpush1.msra.mxu0 0.0
    %292 = vmatprep.subr.mxu0 0.0
    %293 = vmatpush1.msra.mxu0 0.0
    %294 = vmatprep.subr.mxu0 0.0
    %295 = vmatpush1.msra.mxu0 0.0
    %296 = vmatprep.subr.mxu0 0.0
    %297 = vmatpush1.msra.mxu0 0.0
    %298 = vmatprep.subr.mxu0 0.0
    %299 = vmatpush1.msra.mxu0 0.0
    %300 = vmatprep.subr.mxu0 0.0
    %301 = vmatpush1.msra.mxu0 0.0
    %302 = vmatprep.subr.mxu0 0.0
    %303 = vmatpush1.msra.mxu0 0.0
    %304 = vmatprep.subr.mxu0 0.0
    %305 = vmatpush1.msra.mxu0 0.0
    %306 = vmatprep.mubr.f32.mxu0 0.0
    %307 = vmatmul.mubr.f32.gmra.mrb[0].mxu0 %v237
    %v308 = vpop.f32.mrb[0].mxu0
    %v309 = vadd.f32 0.0, %v308
    %v310 = vpop.f32.mrb[0].mxu0
    %311 = vmatprep.mubr.f32.mxu0 0.0
    %312 = vmatmul.mubr.f32.gmra.mrb[0].mxu0 %v240
    %v313 = vpop.f32.mrb[0].mxu0
    %v314 = vadd.f32 0.0, %v313
    %v315 = vpop.f32.mrb[0].mxu0
    %316 = vdwg.mxu0
    %v317 = vld [vmem:[%s5] sm:$0xff]
    %v318 = vadd.f32 %v309, %v317
    %v319 = vxor.u32 %v318, 2147483648
    %v320 = vmul.f32 %v319, 1.442695
    %v321 = vpow.pop %v320
    %v322 = vadd.f32 %v321, 1.0
    %v323 = vrcp.pop %v322
    %v324 = vmul.f32 1.0, %v323
    %v325 = vld [vmem:[%s6] sm:$0xff]
    %327 = vrot.lane.b32.xlu0 %v325, 16
    %v328 = vpop.permute.xlu0 %327
    %v330 = vadd.f32 %v314, %v328
    %v331 = vxor.u32 %v330, 2147483648
    %v332 = vmul.f32 %v331, 1.442695
    %v333 = vpow.pop %v332
    %v334 = vadd.f32 %v333, 1.0
    %v335 = vrcp.pop %v334
    %v336 = vmul.f32 1.0, %v335
    %v337 = vld [vmem:[%s7] sm:$0xff]
    %v338 = vld [vmem:[%s7 + $0x8] sm:$0xff]
    %v339 = vld [vmem:[%s7 + $0x10] sm:$0xff]
    %v340 = vld [vmem:[%s7 + $0x18] sm:$0xff]
    %v342 = vsel %vm235, %v324, 0
    %344 = vmatprep.subr.mxu0 %v338
    %345 = vmatpush1.msra.mxu0 %v337
    %346 = vmatprep.subr.mxu0 %v340
    %347 = vmatpush1.msra.mxu0 %v339
    %348 = vmatprep.subr.mxu0 0.0
    %349 = vmatpush1.msra.mxu0 0.0
    %350 = vmatprep.subr.mxu0 0.0
    %351 = vmatpush1.msra.mxu0 0.0
    %352 = vmatprep.subr.mxu0 0.0
    %353 = vmatpush1.msra.mxu0 0.0
    %354 = vmatprep.subr.mxu0 0.0
    %355 = vmatpush1.msra.mxu0 0.0
    %356 = vmatprep.subr.mxu0 0.0
    %357 = vmatpush1.msra.mxu0 0.0
    %358 = vmatprep.subr.mxu0 0.0
    %359 = vmatpush1.msra.mxu0 0.0
    %360 = vmatprep.subr.mxu0 0.0
    %361 = vmatpush1.msra.mxu0 0.0
    %362 = vmatprep.subr.mxu0 0.0
    %363 = vmatpush1.msra.mxu0 0.0
    %364 = vmatprep.subr.mxu0 0.0
    %365 = vmatpush1.msra.mxu0 0.0
    %366 = vmatprep.subr.mxu0 0.0
    %367 = vmatpush1.msra.mxu0 0.0
    %368 = vmatprep.subr.mxu0 0.0
    %369 = vmatpush1.msra.mxu0 0.0
    %370 = vmatprep.subr.mxu0 0.0
    %371 = vmatpush1.msra.mxu0 0.0
    %372 = vmatprep.subr.mxu0 0.0
    %373 = vmatpush1.msra.mxu0 0.0
    %374 = vmatprep.subr.mxu0 0.0
    %375 = vmatpush1.msra.mxu0 0.0
    %376 = vmatprep.subr.mxu0 0.0
    %377 = vmatpush1.msra.mxu0 0.0
    %378 = vmatprep.subr.mxu0 0.0
    %379 = vmatpush1.msra.mxu0 0.0
    %380 = vmatprep.subr.mxu0 0.0
    %381 = vmatpush1.msra.mxu0 0.0
    %382 = vmatprep.subr.mxu0 0.0
    %383 = vmatpush1.msra.mxu0 0.0
    %384 = vmatprep.subr.mxu0 0.0
    %385 = vmatpush1.msra.mxu0 0.0
    %386 = vmatprep.subr.mxu0 0.0
    %387 = vmatpush1.msra.mxu0 0.0
    %388 = vmatprep.subr.mxu0 0.0
    %389 = vmatpush1.msra.mxu0 0.0
    %390 = vmatprep.subr.mxu0 0.0
    %391 = vmatpush1.msra.mxu0 0.0
    %392 = vmatprep.subr.mxu0 0.0
    %393 = vmatpush1.msra.mxu0 0.0
    %394 = vmatprep.subr.mxu0 0.0
    %395 = vmatpush1.msra.mxu0 0.0
    %396 = vmatprep.subr.mxu0 0.0
    %397 = vmatpush1.msra.mxu0 0.0
    %398 = vmatprep.subr.mxu0 0.0
    %399 = vmatpush1.msra.mxu0 0.0
    %400 = vmatprep.subr.mxu0 0.0
    %401 = vmatpush1.msra.mxu0 0.0
    %402 = vmatprep.subr.mxu0 0.0
    %403 = vmatpush1.msra.mxu0 0.0
    %404 = vmatprep.subr.mxu0 0.0
    %405 = vmatpush1.msra.mxu0 0.0
    %406 = vmatprep.subr.mxu0 0.0
    %407 = vmatpush1.msra.mxu0 0.0
    %408 = vmatprep.mubr.f32.mxu0 0.0
    %409 = vmatmul.mubr.f32.gmra.mrb[0].mxu0 %v342
    %v410 = vpop.f32.mrb[0].mxu0
    %v411 = vadd.f32 0.0, %v410
    %v412 = vpop.f32.mrb[0].mxu0
    %v413 = vadd.f32 0.0, %v412
    %414 = vdwg.mxu0
    %v415 = vld [vmem:[%s8] sm:$0xff]
    %v416 = vld [vmem:[%s8 + $0x8] sm:$0xff]
    %v417 = vld [vmem:[%s8 + $0x10] sm:$0xff]
    %v418 = vld [vmem:[%s8 + $0x18] sm:$0xff]
    %420 = vrot.lane.b32.xlu0 %v336, 112
    %v421 = vpop.permute.xlu0 %420
    %v422 = vsel %vm235, %v421, 0
    %424 = vmatprep.subr.mxu0 %v416
    %425 = vmatpush1.msra.mxu0 %v415
    %426 = vmatprep.subr.mxu0 %v418
    %427 = vmatpush1.msra.mxu0 %v417
    %428 = vmatprep.subr.mxu0 0.0
    %429 = vmatpush1.msra.mxu0 0.0
    %430 = vmatprep.subr.mxu0 0.0
    %431 = vmatpush1.msra.mxu0 0.0
    %432 = vmatprep.subr.mxu0 0.0
    %433 = vmatpush1.msra.mxu0 0.0
    %434 = vmatprep.subr.mxu0 0.0
    %435 = vmatpush1.msra.mxu0 0.0
    %436 = vmatprep.subr.mxu0 0.0
    %437 = vmatpush1.msra.mxu0 0.0
    %438 = vmatprep.subr.mxu0 0.0
    %439 = vmatpush1.msra.mxu0 0.0
    %440 = vmatprep.subr.mxu0 0.0
    %441 = vmatpush1.msra.mxu0 0.0
    %442 = vmatprep.subr.mxu0 0.0
    %443 = vmatpush1.msra.mxu0 0.0
    %444 = vmatprep.subr.mxu0 0.0
    %445 = vmatpush1.msra.mxu0 0.0
    %446 = vmatprep.subr.mxu0 0.0
    %447 = vmatpush1.msra.mxu0 0.0
    %448 = vmatprep.subr.mxu0 0.0
    %449 = vmatpush1.msra.mxu0 0.0
    %450 = vmatprep.subr.mxu0 0.0
    %451 = vmatpush1.msra.mxu0 0.0
    %452 = vmatprep.subr.mxu0 0.0
    %453 = vmatpush1.msra.mxu0 0.0
    %454 = vmatprep.subr.mxu0 0.0
    %455 = vmatpush1.msra.mxu0 0.0
    %456 = vmatprep.subr.mxu0 0.0
    %457 = vmatpush1.msra.mxu0 0.0
    %458 = vmatprep.subr.mxu0 0.0
    %459 = vmatpush1.msra.mxu0 0.0
    %460 = vmatprep.subr.mxu0 0.0
    %461 = vmatpush1.msra.mxu0 0.0
    %462 = vmatprep.subr.mxu0 0.0
    %463 = vmatpush1.msra.mxu0 0.0
    %464 = vmatprep.subr.mxu0 0.0
    %465 = vmatpush1.msra.mxu0 0.0
    %466 = vmatprep.subr.mxu0 0.0
    %467 = vmatpush1.msra.mxu0 0.0
    %468 = vmatprep.subr.mxu0 0.0
    %469 = vmatpush1.msra.mxu0 0.0
    %470 = vmatprep.subr.mxu0 0.0
    %471 = vmatpush1.msra.mxu0 0.0
    %472 = vmatprep.subr.mxu0 0.0
    %473 = vmatpush1.msra.mxu0 0.0
    %474 = vmatprep.subr.mxu0 0.0
    %475 = vmatpush1.msra.mxu0 0.0
    %476 = vmatprep.subr.mxu0 0.0
    %477 = vmatpush1.msra.mxu0 0.0
    %478 = vmatprep.subr.mxu0 0.0
    %479 = vmatpush1.msra.mxu0 0.0
    %480 = vmatprep.subr.mxu0 0.0
    %481 = vmatpush1.msra.mxu0 0.0
    %482 = vmatprep.subr.mxu0 0.0
    %483 = vmatpush1.msra.mxu0 0.0
    %484 = vmatprep.subr.mxu0 0.0
    %485 = vmatpush1.msra.mxu0 0.0
    %486 = vmatprep.subr.mxu0 0.0
    %487 = vmatpush1.msra.mxu0 0.0
    %488 = vmatprep.mubr.f32.mxu0 0.0
    %489 = vmatmul.mubr.f32.gmra.mrb[0].mxu0 %v422
    %v490 = vpop.f32.mrb[0].mxu0
    %v491 = vadd.f32 0.0, %v490
    %v492 = vpop.f32.mrb[0].mxu0
    %v493 = vadd.f32 0.0, %v492
    %494 = vdwg.mxu0
    %v495 = vmul.f32 %v411, %v491
    %v496 = vmul.f32 %v413, %v493
    %v497 = vmul.f32 %v33, %v495
    %v498 = vmul.f32 %v34, %v496
    %499 = vst [vmem:[#allocation2] sm:$0xff] %v497
    %500 = vst [vmem:[#allocation2 + $0x8] sm:$0xff] %v498
    // Predicated region
    $region38: #{tpu_custom_call.1} parent=1 // pred_check
      _
    $region39: #{tpu_custom_call.1} parent=1 // pred_check_branch
      %502 = sbr.rel (0) target = $region41
    $region40: #{tpu_custom_call.1} parent=1 // pred_region
      %s504 = ssub.s32 256, 256
      %505 = vsyncadd [#allocation3], %s504
      %s507 = sshll.u32 [#allocation2], 4
      %s508 = int_to_ptr.vmem [resolvable:$true] %s507
      %510 = dma.vmem_to_hbm [thread:$0]  %s508, 256, %s9, [#allocation3]
    $region41: #{tpu_custom_call.1} parent=1 // pred_fallthru
      _
    // Predicated region
    $region42: #{tpu_custom_call.1} parent=1 // pred_check
      _
    $region43: #{tpu_custom_call.1} parent=1 // pred_check_branch
      %512 = sbr.rel (0) target = $region45
    $region44: #{tpu_custom_call.1} parent=1 // pred_region
      %513 = dma.done [#allocation3], 256
    $region45: #{tpu_custom_call.1} parent=1 // pred_fallthru
      _
    %514 = vsyncpa [#allocation3], 1

</llo_original>
